<compile_context>
chip_gen: v5e
topology: v5e:2x2
jax: 0.10.0
libtpu: 0.0.40
codegen_flags: <defaults>
</compile_context>

<pallas_src>
import functools

import jax
import jax.numpy as jnp
from jax.experimental import pallas as pl
from jax.experimental.pallas import tpu as pltpu


def _pick_tile(dim, preferred, align):
    """Largest tile <= preferred that is a multiple of `align` and divides `dim`;
    fall back to the full dim (a block equal to the full array dim is always legal)."""
    if dim <= preferred:
        return dim
    if dim % align != 0:
        return dim
    t = preferred - (preferred % align)
    while t >= align:
        if dim % t == 0:
            return t
        t -= align
    return dim


def cp_layer_kernel(x_ref, a_ref, bt_ref, w_ref, o_ref, t_ref, *, rank, use_mxu):
    # --- first contraction: only once per batch tile (j == 0) --------------
    @pl.when(pl.program_id(1) == 0)
    def _():
        # t = x_tile @ A   -> (TM, rank), f32 accumulation on the MXU
        t = jnp.dot(x_ref[...], a_ref[...], preferred_element_type=jnp.float32)
        # fold the CP weights AFTER the matmul (scales (TM, rank), not (in, rank))
        t_ref[...] = t * w_ref[...].astype(jnp.float32)

    t = t_ref[...]  # (TM, rank) f32, cached across all out tiles of this row-block

    # --- second contraction: out_tile = t @ B^T ----------------------------
    if use_mxu:
        out = jnp.dot(t, bt_ref[...], preferred_element_type=jnp.float32)
    else:
        # rank is tiny: unrolled VPU broadcast multiply-adds instead of an
        # MXU push/pop whose contraction lanes would be ~empty.
        bt = bt_ref[...].astype(jnp.float32)          # (rank, TN), lane-dense
        out = t[:, 0:1] * bt[0:1, :]
        for r in range(1, rank):
            out = out + t[:, r:r + 1] * bt[r:r + 1, :]

    o_ref[...] = out.astype(o_ref.dtype)


def cp_layer(x, factor_a, factor_b, cp_weights, *, tm=None, tn=None):
    """x: (batch, in), factor_a: (in, R), factor_b: (out, R), cp_weights: (R,)."""
    batch, in_dim = x.shape
    out_dim, rank = factor_b.shape
    assert factor_a.shape == (in_dim, rank)

    # Layout plumbing only: make the out dimension the lane axis of B.
    b_t = factor_b.T                       # (rank, out)
    w2d = cp_weights.reshape(1, rank)

    # Tile sizes: lane-dense out tiles (multiple of 128), MXU-friendly M tiles
    # (multiple of 8/128), and keep the double-buffered x tile under ~8 MiB so
    # large in_dim still fits the v5e/v7x VMEM budget.
    itemsize = jnp.dtype(x.dtype).itemsize
    x_row_bytes = max(in_dim * itemsize, 1)
    max_tm_rows = max(8, (4 * 1024 * 1024) // x_row_bytes)
    TM = tm if tm is not None else _pick_tile(batch, min(256, max_tm_rows), 8)
    TN = tn if tn is not None else _pick_tile(out_dim, 512, 128)

    grid = (batch // TM, out_dim // TN)
    use_mxu = rank >= 64

    kernel = functools.partial(cp_layer_kernel, rank=rank, use_mxu=use_mxu)

    return pl.pallas_call(
        kernel,
        out_shape=jax.ShapeDtypeStruct((batch, out_dim), x.dtype),
        grid_spec=pltpu.PrefetchScalarGridSpec(
            num_scalar_prefetch=0,
            grid=grid,
            in_specs=[
                pl.BlockSpec((TM, in_dim), lambda i, j: (i, 0)),   # x row-block
                pl.BlockSpec((in_dim, rank), lambda i, j: (0, 0)),  # A (resident)
                pl.BlockSpec((rank, TN), lambda i, j: (0, j)),      # B^T col-block
                pl.BlockSpec((1, rank), lambda i, j: (0, 0)),       # cp weights
            ],
            out_specs=pl.BlockSpec((TM, TN), lambda i, j: (i, j)),
            scratch_shapes=[pltpu.VMEM((TM, rank), jnp.float32)],   # cached t
        ),
        compiler_params=pltpu.CompilerParams(
            # batch axis independent (megacore-shardable on v7x); out axis is
            # sequential so the per-batch-tile t scratch is reused safely.
            dimension_semantics=("parallel", "arbitrary"),
            vmem_limit_bytes=32 * 1024 * 1024,
        ),
    )(x, factor_a, b_t, w2d)


def _reference(x, factor_a, factor_b, cp_weights):
    # cp_to_tensor((w, [A, B])) reshaped to (in, out) == A @ diag(w) @ B^T
    w_full = (factor_a * cp_weights[None, :]) @ factor_b.T
    return x @ w_full


if __name__ == "__main__":
    key = jax.random.PRNGKey(0)

    # --- small test, shapes consistent with the module (rank=2) ------------
    batch, in_dim, out_dim, rank = 2, 16, 32, 2
    kx, kw, ka, kb, key = jax.random.split(key, 5)
    cp_weights = jax.random.uniform(kw, (rank,), jnp.float32, -0.1, 0.1)
    factor_a = jax.random.uniform(ka, (in_dim, rank), jnp.float32, -0.1, 0.1)
    factor_b = jax.random.uniform(kb, (out_dim, rank), jnp.float32, -0.1, 0.1)
    x = jax.random.normal(kx, (batch, in_dim), jnp.float32)

    out = jax.block_until_ready(cp_layer(x, factor_a, factor_b, cp_weights))
    ref = _reference(x, factor_a, factor_b, cp_weights)
    assert out.shape == (batch, out_dim)
    assert jnp.allclose(out, ref, atol=1e-5, rtol=1e-5)

    # --- moderate test that actually exercises the 2D tiled grid -----------
    batch, in_dim, out_dim, rank = 512, 128, 1024, 4
    kx, kw, ka, kb, key = jax.random.split(key, 5)
    cp_weights = jax.random.uniform(kw, (rank,), jnp.float32, -0.1, 0.1)
    factor_a = jax.random.uniform(ka, (in_dim, rank), jnp.float32, -0.1, 0.1)
    factor_b = jax.random.uniform(kb, (out_dim, rank), jnp.float32, -0.1, 0.1)
    x = jax.random.normal(kx, (batch, in_dim), jnp.float32)

    out2 = jax.block_until_ready(cp_layer(x, factor_a, factor_b, cp_weights))
    ref2 = _reference(x, factor_a, factor_b, cp_weights)
    assert out2.shape == (batch, out_dim)
    assert jnp.allclose(out2, ref2, atol=1e-4, rtol=1e-4)

    print("KERNEL_OK")
</pallas_src>

<mosaic_0001>
module attributes {stable_mosaic.version = 11 : i64} {
  func.func @cp_layer_kernel(%arg0: i32, %arg1: i32, %arg2: memref<2x16xf32, #tpu.memory_space<vmem>>, %arg3: memref<16x2xf32, #tpu.memory_space<vmem>>, %arg4: memref<2x32xf32, #tpu.memory_space<vmem>>, %arg5: memref<1x2xf32, #tpu.memory_space<vmem>>, %arg6: memref<2x32xf32, #tpu.memory_space<vmem>>, %arg7: memref<2x2xf32, #tpu.memory_space<vmem>>) attributes {dimension_semantics = [#tpu.dimension_semantics<parallel>, #tpu.dimension_semantics<arbitrary>], iteration_bounds = array<i64: 1, 1>, scalar_prefetch = 0 : i64, scratch_operands = 1 : i64, tpu.core_type = #tpu.core_type<tc>, window_params = [{transform_indices = @transform_0, window_bounds = array<i64: 2, 16>}, {pipeline_mode = #tpu.pipeline_mode<synchronous>, transform_indices = @transform_1, window_bounds = array<i64: 16, 2>}, {transform_indices = @transform_2, window_bounds = array<i64: 2, 32>}, {pipeline_mode = #tpu.pipeline_mode<synchronous>, transform_indices = @transform_3, window_bounds = array<i64: 1, 2>}, {transform_indices = @transform_4, window_bounds = array<i64: 2, 32>}]} {
    %c0_i32 = arith.constant 0 : i32
    %0 = arith.cmpi eq, %arg1, %c0_i32 : i32
    %1 = arith.extui %0 : i1 to i32
    %c0_i32_0 = arith.constant 0 : i32
    %2 = arith.cmpi ne, %1, %c0_i32_0 : i32
    scf.if %2 {
      %c0_6 = arith.constant 0 : index
      %c0_7 = arith.constant 0 : index
      %17 = vector.load %arg2[%c0_6, %c0_7] : memref<2x16xf32, #tpu.memory_space<vmem>>, vector<2x16xf32>
      %c0_8 = arith.constant 0 : index
      %c0_9 = arith.constant 0 : index
      %18 = vector.load %arg3[%c0_8, %c0_9] : memref<16x2xf32, #tpu.memory_space<vmem>>, vector<16x2xf32>
      %cst = arith.constant dense<0.000000e+00> : vector<2x2xf32>
      %19 = tpu.matmul %17, %18, %cst {dimension_numbers = #tpu.dot_dimension_numbers<[1], [0], [0], [1], [0, 0, 1, 1], [], []>} : vector<2x16xf32>, vector<16x2xf32>, vector<2x2xf32> -> vector<2x2xf32>
      %c0_10 = arith.constant 0 : index
      %c0_11 = arith.constant 0 : index
      %20 = vector.load %arg5[%c0_10, %c0_11] : memref<1x2xf32, #tpu.memory_space<vmem>>, vector<1x2xf32>
      %21 = vector.broadcast %20 : vector<1x2xf32> to vector<2x2xf32>
      %22 = arith.mulf %19, %21 : vector<2x2xf32>
      %c0_12 = arith.constant 0 : index
      %c0_13 = arith.constant 0 : index
      %23 = vector.load %arg7[%c0_12, %c0_13] : memref<2x2xf32, #tpu.memory_space<vmem>>, vector<2x2xf32>
      tpu.vector_store %arg7[%c0_12, %c0_13], %22 {strides = array<i32>} : memref<2x2xf32, #tpu.memory_space<vmem>>, vector<2x2xf32>,
    } else {
    }
    %c0 = arith.constant 0 : index
    %c0_1 = arith.constant 0 : index
    %3 = vector.load %arg7[%c0, %c0_1] : memref<2x2xf32, #tpu.memory_space<vmem>>, vector<2x2xf32>
    %c0_2 = arith.constant 0 : index
    %c0_3 = arith.constant 0 : index
    %4 = vector.load %arg4[%c0_2, %c0_3] : memref<2x32xf32, #tpu.memory_space<vmem>>, vector<2x32xf32>
    %5 = vector.extract_strided_slice %3 {offsets = [0, 0], sizes = [2, 1], strides = [1, 1]} : vector<2x2xf32> to vector<2x1xf32>
    %6 = vector.extract_strided_slice %4 {offsets = [0, 0], sizes = [1, 32], strides = [1, 1]} : vector<2x32xf32> to vector<1x32xf32>
    %7 = vector.broadcast %5 : vector<2x1xf32> to vector<2x32xf32>
    %8 = vector.broadcast %6 : vector<1x32xf32> to vector<2x32xf32>
    %9 = arith.mulf %7, %8 : vector<2x32xf32>
    %10 = vector.extract_strided_slice %3 {offsets = [0, 1], sizes = [2, 1], strides = [1, 1]} : vector<2x2xf32> to vector<2x1xf32>
    %11 = vector.extract_strided_slice %4 {offsets = [1, 0], sizes = [1, 32], strides = [1, 1]} : vector<2x32xf32> to vector<1x32xf32>
    %12 = vector.broadcast %10 : vector<2x1xf32> to vector<2x32xf32>
    %13 = vector.broadcast %11 : vector<1x32xf32> to vector<2x32xf32>
    %14 = arith.mulf %12, %13 : vector<2x32xf32>
    %15 = arith.addf %9, %14 : vector<2x32xf32>
    %c0_4 = arith.constant 0 : index
    %c0_5 = arith.constant 0 : index
    %16 = vector.load %arg6[%c0_4, %c0_5] : memref<2x32xf32, #tpu.memory_space<vmem>>, vector<2x32xf32>
    tpu.vector_store %arg6[%c0_4, %c0_5], %15 {strides = array<i32>} : memref<2x32xf32, #tpu.memory_space<vmem>>, vector<2x32xf32>,
    return
  }
  func.func @transform_0(%arg0: i32, %arg1: i32) -> (i32, i32) {
    %c0_i32 = arith.constant 0 : i32
    %c0_i32_0 = arith.constant 0 : i32
    return %arg0, %c0_i32 : i32, i32
  }
  func.func @transform_1(%arg0: i32, %arg1: i32) -> (i32, i32) {
    %c0_i32 = arith.constant 0 : i32
    %c0_i32_0 = arith.constant 0 : i32
    %c0_i32_1 = arith.constant 0 : i32
    return %c0_i32, %c0_i32_0 : i32, i32
  }
  func.func @transform_2(%arg0: i32, %arg1: i32) -> (i32, i32) {
    %c0_i32 = arith.constant 0 : i32
    %c0_i32_0 = arith.constant 0 : i32
    return %c0_i32, %arg1 : i32, i32
  }
  func.func @transform_3(%arg0: i32, %arg1: i32) -> (i32, i32) {
    %c0_i32 = arith.constant 0 : i32
    %c0_i32_0 = arith.constant 0 : i32
    %c0_i32_1 = arith.constant 0 : i32
    return %c0_i32, %c0_i32_0 : i32, i32
  }
  func.func @transform_4(%arg0: i32, %arg1: i32) -> (i32, i32) {
    %c0_i32 = arith.constant 0 : i32
    return %arg0, %arg1 : i32, i32
  }
}

</mosaic_0001>

<llo_original>
// kernel: tpu_custom_call.1
$region0: #{tpu_custom_call.1}
  #allocation0 [shape = 'u32[]', space=smem, size = 0x4, offset = 0x4, fixed_abs, tag = 'smem constant byte address 0x4 - core index']
  #allocation1 [shape = 'u32[72,128]{1,0:T(1,128)}', space=vmem, size = 0x9000, scoped, tag = 'internal scratch']
  #allocation2 [shape = 'f32[2,2]{1,0:T(2,128)}', space=vmem, size = 0x400, scoped, tag = 'scratch operand']
  %s0 = inlined_call_operand.vmem [shape: f32[2,16], index: 0, kind: input, shape index: {}]
  %s1 = inlined_call_operand.vmem [shape: f32[16,2], index: 1, kind: input, shape index: {}]
  %s2 = inlined_call_operand.vmem [shape: f32[2,32], index: 2, kind: input, shape index: {}]
  %s3 = inlined_call_operand.vmem [shape: f32[1,2], index: 3, kind: input, shape index: {}]
  %s4 = inlined_call_operand.hbm [shape: f32[2,32], index: 4, kind: output, shape index: {}]
  %s5 = sld [smem:[#allocation0]]
  $region30: #{tpu_custom_call.1} parent=0
    _
  %s7 = ssub.s32 1, %s5
  %s8 = scalar_select 0, %s7, %s5
  $region1: #{tpu_custom_call.1} parent=0
    #allocation3 [shape = 'u8[1024]{0}', space=vmem, size = 0x400, scoped, tag = 'output window, operand 0, single buffered']
    #allocation4 [shape = 's32[1]{0}', space=sflag, size = 0x4, scoped, tag = 'scoped memory for tpu_custom_call.1']
    %9 = vsyncpa [#allocation4], 0
    // Predicated region
    $region2: #{tpu_custom_call.1} parent=1 // pred_check
      _
    $region3: #{tpu_custom_call.1} parent=1 // pred_check_branch
      %11 = sbr.rel (0) target = $region5
    $region4: #{tpu_custom_call.1} parent=1 // pred_region
      _
    $region5: #{tpu_custom_call.1} parent=1 // pred_fallthru
      _
    // Predicated region
    $region6: #{tpu_custom_call.1} parent=1 // pred_check
      _
    $region7: #{tpu_custom_call.1} parent=1 // pred_check_branch
      %13 = sbr.rel (0) target = $region9
    $region8: #{tpu_custom_call.1} parent=1 // pred_region
      _
    $region9: #{tpu_custom_call.1} parent=1 // pred_fallthru
      _
    // Predicated region
    $region10: #{tpu_custom_call.1} parent=1 // pred_check
      _
    $region11: #{tpu_custom_call.1} parent=1 // pred_check_branch
      %15 = sbr.rel (0) target = $region13
    $region12: #{tpu_custom_call.1} parent=1 // pred_region
      _
    $region13: #{tpu_custom_call.1} parent=1 // pred_fallthru
      _
    // Predicated region
    $region14: #{tpu_custom_call.1} parent=1 // pred_check
      _
    $region15: #{tpu_custom_call.1} parent=1 // pred_check_branch
      %17 = sbr.rel (0) target = $region17
    $region16: #{tpu_custom_call.1} parent=1 // pred_region
      _
    $region17: #{tpu_custom_call.1} parent=1 // pred_fallthru
      _
    %p18 = scmp.eq.s32.totalorder 0, 0
    // Predicated region
    $region18: #{tpu_custom_call.1} parent=1 // pred_check
      %p19 = pneg %p18
    $region19: #{tpu_custom_call.1} parent=1 // pred_check_branch
      %21 = sbr.rel (%p19) target = $region21
    $region20: #{tpu_custom_call.1} parent=1 // pred_region
      %v22 = vld [vmem:[%s0] sm:$0x3]
      %v23 = vld [vmem:[%s1] sm:$0xff]
      %v24 = vld [vmem:[%s1 + $0x8] sm:$0xff]
      %vm25 = vcmask 130048
      %v27 = vsel %vm25, %v22, 0
      %29 = vmatpush.msra.mxu0 0.0
      %30 = vmatpush.msra.mxu0 0.0
      %31 = vmatpush.msra.mxu0 0.0
      %32 = vmatpush.msra.mxu0 0.0
      %33 = vmatpush.msra.mxu0 0.0
      %34 = vmatpush.msra.mxu0 0.0
      %35 = vmatpush.msra.mxu0 0.0
      %36 = vmatpush.msra.mxu0 0.0
      %37 = vmatpush.msra.mxu0 0.0
      %38 = vmatpush.msra.mxu0 0.0
      %39 = vmatpush.msra.mxu0 0.0
      %40 = vmatpush.msra.mxu0 0.0
      %41 = vmatpush.msra.mxu0 0.0
      %42 = vmatpush.msra.mxu0 0.0
      %43 = vmatpush.msra.mxu0 %v24
      %44 = vmatpush.msra.mxu0 %v23
      %45 = vmatmul.f32.gmra.mxu0 %v27
      %v46 = vpop.f32.mrf.mxu0
      %v47 = vadd.f32 0.0, %v46
      %48 = vdwg.mxu0
      %v49 = vld [vmem:[%s3] sm:$0x1]
      %v51 = vperm.slane %v49, 0
      %v53 = vmul.f32 %v47, %v51
      %vm54 = vcmask 9216
      %55 = vst.msk [vmem:[#allocation2] sm:$0x3] %vm54, %v53
    $region21: #{tpu_custom_call.1} parent=1 // pred_fallthru
      _
    %v56 = vld [vmem:[#allocation2] sm:$0x3]
    %v57 = vld [vmem:[%s2] sm:$0x3]
    %59 = vset.pattern.permute.xlu0 0
    %60 = vperm.xlu0 %59, %v56
    %v61 = vpop.permute.xlu0 %60
    %v63 = vperm.slane %v57, 0
    %v64 = vmul.f32 %v61, %v63
    %65 = vset.pattern.permute.xlu0 1
    %66 = vperm.xlu0 %65, %v56
    %v67 = vpop.permute.xlu0 %66
    %v69 = vperm.slane %v57, 1
    %v70 = vmul.f32 %v67, %v69
    %v71 = vadd.f32 %v64, %v70
    %vm72 = vcmask 254976
    %73 = vst.msk [vmem:[#allocation3] sm:$0x3] %vm72, %v71
    // Predicated region
    $region22: #{tpu_custom_call.1} parent=1 // pred_check
      _
    $region23: #{tpu_custom_call.1} parent=1 // pred_check_branch
      %75 = sbr.rel (0) target = $region25
    $region24: #{tpu_custom_call.1} parent=1 // pred_region
      %77 = vsyncadd [#allocation4], 0
      %s79 = sshll.u32 [#allocation3], 4
      %s80 = int_to_ptr.vmem [resolvable:$true] %s79
      %s81 = sshll.u32 %s4, 4
      %s82 = int_to_ptr.hbm [resolvable:$true] %s81
      %84 = dma.vmem_to_hbm [thread:$0]  %s80, 32, %s82, [#allocation4]
    $region25: #{tpu_custom_call.1} parent=1 // pred_fallthru
      _
    // Predicated region
    $region26: #{tpu_custom_call.1} parent=1 // pred_check
      _
    $region27: #{tpu_custom_call.1} parent=1 // pred_check_branch
      %86 = sbr.rel (0) target = $region29
    $region28: #{tpu_custom_call.1} parent=1 // pred_region
      %88 = dma.done [#allocation4], 32
    $region29: #{tpu_custom_call.1} parent=1 // pred_fallthru
      _
    %89 = vsyncpa [#allocation4], 1

</llo_original>
